<compile_context>
chip_gen: v6e
topology: v6e:2x2x1
jax: 0.10.0
libtpu: 0.0.40
codegen_flags: <defaults>
</compile_context>

<pallas_src>
import functools

import jax
import jax.numpy as jnp
from jax.experimental import pallas as pl
from jax.experimental.pallas import tpu as pltpu

_EPS = 1e-8


def _vmem_capacity_bytes():
    try:
        return int(pltpu.get_tpu_info().vmem_capacity_bytes)
    except Exception:
        return 64 * 1024 * 1024  # conservative default (v7x per-TC VMEM)


def _largest_aligned_divisor(m, max_cols):
    """Largest tm with tm % 128 == 0, tm | m and tm <= max(max_cols, 128).

    Requires m % 128 == 0.
    """
    q = m // 128
    d = max(1, min(q, max_cols // 128))
    while d > 1 and q % d != 0:
        d -= 1
    return 128 * d


def _mbstd_fused_kernel(x_ref, o_ref, acc_ref, *, num_x_tiles, inv_m):
    # x_ref : (N, TM) tile of x (block index clamped to the last x-tile during
    #         tail steps; identical index => DMA elided by the pipeline).
    # o_ref : (N, TM) tile of the concatenated output.
    # acc_ref: (1, TM) f32 running per-column stddev sums (lane-wise carry).
    i = pl.program_id(0)

    @pl.when(i == 0)
    def _init():
        acc_ref[...] = jnp.zeros_like(acc_ref)

    @pl.when(i < num_x_tiles)
    def _copy_and_reduce():
        xt = x_ref[...]                 # single load of the tile
        o_ref[...] = xt                 # lane-dense pass-through copy
        xf = xt.astype(jnp.float32)
        mu = jnp.mean(xf, axis=0, keepdims=True)                # (1, TM)
        var = jnp.mean((xf - mu) ** 2, axis=0, keepdims=True)   # (1, TM)
        acc_ref[...] += jnp.sqrt(var + _EPS)   # no per-step cross-lane reduce

    @pl.when(i >= num_x_tiles)
    def _write_extra_channel():
        # Deferred reduce + scale: mean over all M positions of the stddevs.
        s = jnp.sum(acc_ref[...], axis=1, keepdims=True) * inv_m     # (1, 1)
        o_ref[...] = jnp.broadcast_to(s, o_ref.shape).astype(o_ref.dtype)


def _mbstd_reduce_kernel(x_ref, sum_ref, acc_ref):
    # Reduction-only kernel for the unaligned-M fallback path.
    i = pl.program_id(0)

    @pl.when(i == 0)
    def _init():
        acc_ref[...] = jnp.zeros_like(acc_ref)

    xf = x_ref[...].astype(jnp.float32)
    mu = jnp.mean(xf, axis=0, keepdims=True)
    var = jnp.mean((xf - mu) ** 2, axis=0, keepdims=True)
    acc_ref[...] += jnp.sqrt(var + _EPS)

    @pl.when(i == pl.num_programs(0) - 1)
    def _finalize():
        sum_ref[...] = jnp.sum(acc_ref[...], axis=1, keepdims=True)  # (1, 1)


def minibatch_stddev_concat(x, averaging="all"):
    """x: (N, C, H, W) -> (N, C+1, H, W). Matches the module with averaging='all'."""
    if averaging.lower() != "all":
        # TODO(synk): only averaging='all' (the module default) is implemented.
        raise NotImplementedError("only averaging='all' is supported")

    n, c, h, w = x.shape
    hw = h * w
    m = c * hw
    x_flat = x.reshape(n, m)
    itemsize = jnp.dtype(x.dtype).itemsize

    # Generation-aware VMEM sizing (64 MiB on v7x vs 128 MiB on v5e/v6e).
    vmem_cap = _vmem_capacity_bytes()
    tile_budget = vmem_cap // 2  # keep per-step footprint <= ~half of physical
    # 2x double-buffered in + 2x out + ~2 f32 temporaries, per batch row/column.
    bytes_per_col = (4 * itemsize + 8) * n + 4
    max_cols = max(128, tile_budget // bytes_per_col)

    compiler_params = pltpu.CompilerParams(
        # Scalar/lane accumulator is carried across the tile axis -> sequential.
        dimension_semantics=("arbitrary",),
        vmem_limit_bytes=(vmem_cap * 3) // 4,
    )
    cost = pl.CostEstimate(
        flops=5 * n * m,                                   # mean/var/copy passes
        transcendentals=m,                                 # per-column sqrt
        bytes_accessed=n * m * itemsize + n * (m + hw) * itemsize,
    )

    if m % 128 == 0:
        # --- Fused path: copy x through and write the extra channel in-kernel.
        tm = _largest_aligned_divisor(m, max_cols)
        num_x_tiles = m // tm
        grid = (pl.cdiv(m + hw, tm),)
        kernel = functools.partial(
            _mbstd_fused_kernel, num_x_tiles=num_x_tiles, inv_m=1.0 / m
        )
        out_flat = pl.pallas_call(
            kernel,
            out_shape=jax.ShapeDtypeStruct((n, m + hw), x.dtype),
            grid=grid,
            in_specs=[
                pl.BlockSpec(
                    (n, tm),
                    lambda i: (0, jnp.minimum(i, num_x_tiles - 1)),
                )
            ],
            out_specs=pl.BlockSpec((n, tm), lambda i: (0, i)),
            scratch_shapes=[pltpu.VMEM((1, tm), jnp.float32)],
            compiler_params=compiler_params,
            cost_estimate=cost,
        )(x_flat)
        return out_flat.reshape(n, c + 1, h, w)

    # --- Fallback path (M not a multiple of 128): tiled reduction over a
    # zero-padded copy; the tiny (N, HW) extra channel is written by XLA.
    m_pad = ((m + 127) // 128) * 128
    x_pad = jnp.pad(x_flat, ((0, 0), (0, m_pad - m)))
    tm = _largest_aligned_divisor(m_pad, max_cols)
    std_sum = pl.pallas_call(
        _mbstd_reduce_kernel,
        out_shape=jax.ShapeDtypeStruct((1, 1), jnp.float32),
        grid=(m_pad // tm,),
        in_specs=[pl.BlockSpec((n, tm), lambda i: (0, i))],
        out_specs=pl.BlockSpec((1, 1), lambda i: (0, 0)),
        scratch_shapes=[pltpu.VMEM((1, tm), jnp.float32)],
        compiler_params=compiler_params,
        cost_estimate=cost,
    )(x_pad)
    # Each zero-padded column contributes exactly sqrt(eps) to the sum.
    pad_cols = m_pad - m
    s = (std_sum[0, 0] - pad_cols * jnp.sqrt(jnp.float32(_EPS))) / m
    extra = jnp.broadcast_to(s, (n, 1, h, w)).astype(x.dtype)
    return jnp.concatenate([x, extra], axis=1)


def _reference(x):
    xf = x.astype(jnp.float32)
    mean_n = jnp.mean(xf, axis=0, keepdims=True)
    std_n = jnp.sqrt(jnp.mean((xf - mean_n) ** 2, axis=0, keepdims=True) + 1e-8)
    s = jnp.mean(std_n)
    n, c, h, w = x.shape
    extra = jnp.full((n, 1, h, w), s, dtype=x.dtype)
    return jnp.concatenate([x, extra], axis=1)


if __name__ == "__main__":
    key = jax.random.PRNGKey(0)

    # Main (aligned) path.
    N, C, H, W = 2, 4, 16, 16
    x = jax.random.normal(key, (N, C, H, W), dtype=jnp.float32)
    out = jax.block_until_ready(minibatch_stddev_concat(x))
    ref = _reference(x)
    assert out.shape == (N, C + 1, H, W), out.shape
    assert jnp.allclose(out, ref, atol=1e-5, rtol=1e-5), "mismatch vs reference"

    # Fallback (unaligned M) path.
    x2 = jax.random.normal(jax.random.PRNGKey(1), (2, 3, 5, 7), dtype=jnp.float32)
    out2 = jax.block_until_ready(minibatch_stddev_concat(x2))
    ref2 = _reference(x2)
    assert out2.shape == (2, 4, 5, 7), out2.shape
    assert jnp.allclose(out2, ref2, atol=1e-5, rtol=1e-5), "mismatch vs reference (fallback)"

    print("KERNEL_OK")
</pallas_src>

<mosaic_0001>
module attributes {stable_mosaic.version = 11 : i64} {
  func.func @_mbstd_fused_kernel(%arg0: i32, %arg1: memref<2x1024xf32, #tpu.memory_space<vmem>>, %arg2: memref<2x1024xf32, #tpu.memory_space<vmem>>, %arg3: memref<1x1024xf32, #tpu.memory_space<vmem>>) attributes {dimension_semantics = [#tpu.dimension_semantics<arbitrary>], iteration_bounds = array<i64: 2>, scalar_prefetch = 0 : i64, scratch_operands = 1 : i64, tpu.core_type = #tpu.core_type<tc>, window_params = [{transform_indices = @transform_0, window_bounds = array<i64: 2, 1024>}, {transform_indices = @transform_1, window_bounds = array<i64: 2, 1024>}]} {
    %c0_i32 = arith.constant 0 : i32
    %0 = arith.cmpi eq, %arg0, %c0_i32 : i32
    %1 = arith.extui %0 : i1 to i32
    %c0_i32_0 = arith.constant 0 : i32
    %2 = arith.cmpi ne, %1, %c0_i32_0 : i32
    scf.if %2 {
      %cst = arith.constant 0.000000e+00 : f32
      %9 = vector.broadcast %cst : f32 to vector<1x1024xf32>
      %c0 = arith.constant 0 : index
      %c0_4 = arith.constant 0 : index
      %10 = vector.load %arg3[%c0, %c0_4] : memref<1x1024xf32, #tpu.memory_space<vmem>>, vector<1x1024xf32>
      tpu.vector_store %arg3[%c0, %c0_4], %9 {strides = array<i32>} : memref<1x1024xf32, #tpu.memory_space<vmem>>, vector<1x1024xf32>,
    } else {
    }
    %c1_i32 = arith.constant 1 : i32
    %3 = arith.cmpi slt, %arg0, %c1_i32 : i32
    %4 = arith.extui %3 : i1 to i32
    %c0_i32_1 = arith.constant 0 : i32
    %5 = arith.cmpi ne, %4, %c0_i32_1 : i32
    scf.if %5 {
      %c0 = arith.constant 0 : index
      %c0_4 = arith.constant 0 : index
      %9 = vector.load %arg1[%c0, %c0_4] : memref<2x1024xf32, #tpu.memory_space<vmem>>, vector<2x1024xf32>
      %c0_5 = arith.constant 0 : index
      %c0_6 = arith.constant 0 : index
      %10 = vector.load %arg2[%c0_5, %c0_6] : memref<2x1024xf32, #tpu.memory_space<vmem>>, vector<2x1024xf32>
      tpu.vector_store %arg2[%c0_5, %c0_6], %9 {strides = array<i32>} : memref<2x1024xf32, #tpu.memory_space<vmem>>, vector<2x1024xf32>,
      %cst = arith.constant dense<0.000000e+00> : vector<1024xf32>
      %11 = vector.multi_reduction <add>, %9, %cst [0] : vector<2x1024xf32> to vector<1024xf32>
      %12 = vector.shape_cast %11 : vector<1024xf32> to vector<1x1024xf32>
      %cst_7 = arith.constant 2.000000e+00 : f32
      %13 = vector.broadcast %cst_7 : f32 to vector<1x1024xf32>
      %14 = arith.divf %12, %13 : vector<1x1024xf32>
      %15 = vector.broadcast %14 : vector<1x1024xf32> to vector<2x1024xf32>
      %16 = arith.subf %9, %15 : vector<2x1024xf32>
      %17 = arith.mulf %16, %16 : vector<2x1024xf32>
      %cst_8 = arith.constant dense<0.000000e+00> : vector<1024xf32>
      %18 = vector.multi_reduction <add>, %17, %cst_8 [0] : vector<2x1024xf32> to vector<1024xf32>
      %19 = vector.shape_cast %18 : vector<1024xf32> to vector<1x1024xf32>
      %cst_9 = arith.constant 2.000000e+00 : f32
      %20 = vector.broadcast %cst_9 : f32 to vector<1x1024xf32>
      %21 = arith.divf %19, %20 : vector<1x1024xf32>
      %c0_10 = arith.constant 0 : index
      %c0_11 = arith.constant 0 : index
      %22 = vector.load %arg3[%c0_10, %c0_11] : memref<1x1024xf32, #tpu.memory_space<vmem>>, vector<1x1024xf32>
      %cst_12 = arith.constant 9.99999993E-9 : f32
      %23 = vector.broadcast %cst_12 : f32 to vector<1x1024xf32>
      %24 = arith.addf %21, %23 : vector<1x1024xf32>
      %25 = math.sqrt %24 : vector<1x1024xf32>
      %26 = arith.addf %22, %25 : vector<1x1024xf32>
      %c0_13 = arith.constant 0 : index
      %c0_14 = arith.constant 0 : index
      %27 = vector.load %arg3[%c0_13, %c0_14] : memref<1x1024xf32, #tpu.memory_space<vmem>>, vector<1x1024xf32>
      tpu.vector_store %arg3[%c0_13, %c0_14], %26 {strides = array<i32>} : memref<1x1024xf32, #tpu.memory_space<vmem>>, vector<1x1024xf32>,
    } else {
    }
    %c1_i32_2 = arith.constant 1 : i32
    %6 = arith.cmpi sge, %arg0, %c1_i32_2 : i32
    %7 = arith.extui %6 : i1 to i32
    %c0_i32_3 = arith.constant 0 : i32
    %8 = arith.cmpi ne, %7, %c0_i32_3 : i32
    scf.if %8 {
      %c0 = arith.constant 0 : index
      %c0_4 = arith.constant 0 : index
      %9 = vector.load %arg3[%c0, %c0_4] : memref<1x1024xf32, #tpu.memory_space<vmem>>, vector<1x1024xf32>
      %cst = arith.constant dense<0.000000e+00> : vector<1xf32>
      %10 = vector.multi_reduction <add>, %9, %cst [1] : vector<1x1024xf32> to vector<1xf32>
      %11 = vector.shape_cast %10 : vector<1xf32> to vector<1x1xf32>
      %cst_5 = arith.constant 9.765625E-4 : f32
      %12 = vector.broadcast %cst_5 : f32 to vector<1x1xf32>
      %13 = arith.mulf %11, %12 : vector<1x1xf32>
      %14 = vector.shape_cast %13 : vector<1x1xf32> to vector<1x1xf32>
      %15 = vector.broadcast %14 : vector<1x1xf32> to vector<2x1024xf32>
      %c0_6 = arith.constant 0 : index
      %c0_7 = arith.constant 0 : index
      %16 = vector.load %arg2[%c0_6, %c0_7] : memref<2x1024xf32, #tpu.memory_space<vmem>>, vector<2x1024xf32>
      tpu.vector_store %arg2[%c0_6, %c0_7], %15 {strides = array<i32>} : memref<2x1024xf32, #tpu.memory_space<vmem>>, vector<2x1024xf32>,
    } else {
    }
    return
  }
  func.func @transform_0(%arg0: i32) -> (i32, i32) {
    %c0_i32 = arith.constant 0 : i32
    %0 = arith.minsi %arg0, %c0_i32 : i32
    %c0_i32_0 = arith.constant 0 : i32
    %c0_i32_1 = arith.constant 0 : i32
    return %c0_i32_0, %0 : i32, i32
  }
  func.func @transform_1(%arg0: i32) -> (i32, i32) {
    %c0_i32 = arith.constant 0 : i32
    %c0_i32_0 = arith.constant 0 : i32
    return %c0_i32, %arg0 : i32, i32
  }
}

</mosaic_0001>

<llo_original>
// kernel: tpu_custom_call.1
$region0: #{tpu_custom_call.1}
  #allocation0 [shape = 'u32[]', space=smem, size = 0x4, offset = 0x4, fixed_abs, tag = 'smem constant byte address 0x4 - core index']
  #allocation1 [shape = 'u32[144,128]{1,0:T(1,128)}', space=vmem, size = 0x12000, scoped, tag = 'internal scratch']
  #allocation2 [shape = 'f32[1,1024]{1,0:T(1,128)}', space=vmem, size = 0x1000, scoped, tag = 'scratch operand']
  %s0 = inlined_call_operand.hbm [shape: f32[2,1024], index: 0, kind: input, shape index: {}]
  %s1 = inlined_call_operand.hbm [shape: f32[2,1280], index: 1, kind: output, shape index: {}]
  %s2 = sld [smem:[#allocation0]]
  $region53: #{tpu_custom_call.1} parent=0
    _
  %s4 = ssub.s32 1, %s2
  %s5 = scalar_select 0, %s4, %s2
  $region1: #{tpu_custom_call.1} parent=0
    #allocation3 [shape = 'u8[16384]{0}', space=vmem, size = 0x4000, scoped, tag = 'input window, operand 0']
    #allocation4 [shape = 's32[2]{0}', space=sflag, size = 0x8, scoped, tag = 'scoped memory for tpu_custom_call.1']
    #allocation5 [shape = 's32[2]{0}', space=sflag, size = 0x8, scoped, tag = 'scoped memory for tpu_custom_call.1']
    #allocation6 [shape = 'u8[16384]{0}', space=vmem, size = 0x4000, scoped, tag = 'output window, operand 0']
    %6 = vsyncpa [#allocation4], 0
    %s7 = scalar_lea.sflag [#allocation4], 1
    %8 = vsyncpa %s7, 0
    %9 = vsyncpa [#allocation5], 0
    %s10 = scalar_lea.sflag [#allocation5], 1
    %11 = vsyncpa %s10, 0
    loop: start=0, step=1, limit=4
    $region2: #{tpu_custom_call.1} parent=1 // loop_pre_header
      _
    $region3: #{tpu_custom_call.1} parent=1 // loop_header
      %s13 = sphi 0, %s17
      %p14 = scmp.ge.s32.totalorder %s13, 4
      %s27 = sphi 0, %s29
      %s30 = sphi 0, %s27
      %s31 = sphi 0, %s30
      %s47 = sphi 0, %s31
      %s53 = sphi 0, %s55
      %s56 = sphi 0, %s53
      %s57 = sphi 0, %s56
      %s73 = sphi 0, %s57
    $region4: #{tpu_custom_call.1} parent=1 // loop_header_branch
      %16 = sbr.rel (%p14) target = $region8
    $region5: #{tpu_custom_call.1} parent=1 // loop_body
      %s18 = ssub.s32 %s13, 1
      %s19 = ssub.s32 %s13, 2
      %s20 = sadd.s32 %s13, 1
      %p21 = scmp.lt.s32.totalorder %s13, 0
      %s22 = scalar_select %p21, %s13, 0
      %p23 = scmp.lt.s32.totalorder %s20, 0
      %s24 = scalar_select %p23, %s20, 0
      %s25 = ssub.s32 %s22, %s24
      %p26 = scmp.eq.s32.totalorder %s25, 0
      %s28 = sadd.s32 %s27, 1
      %s29 = scalar_select %p26, %s27, %s28
      %p32 = pneg %p26
      %p33 = scmp.eq.s32.totalorder %s13, 1
      %p34 = por %p32, %p33
      %p35 = scmp.ne.s32.totalorder %s27, %s30
      %p36 = scmp.eq.s32.totalorder %s13, 0
      %p37 = por %p35, %p36
      %p38 = scmp.ne.s32.totalorder %s27, %s30
      %p39 = scmp.eq.s32.totalorder %s18, 1
      %p40 = por %p38, %p39
      %p41 = scmp.ne.s32.totalorder %s30, %s31
      %p42 = scmp.eq.s32.totalorder %s18, 0
      %p43 = por %p41, %p42
      %p44 = scmp.ne.s32.totalorder %s30, %s31
      %p45 = scmp.eq.s32.totalorder %s19, 1
      %p46 = por %p44, %p45
      %p48 = scmp.ne.s32.totalorder %s31, %s47
      %p49 = scmp.eq.s32.totalorder %s19, 0
      %p50 = por %p48, %p49
      %s51 = ssub.s32 %s13, %s20
      %p52 = scmp.eq.s32.totalorder %s51, 0
      %s54 = sadd.s32 %s53, 1
      %s55 = scalar_select %p52, %s53, %s54
      %p58 = pneg %p52
      %p59 = scmp.eq.s32.totalorder %s13, 1
      %p60 = por %p58, %p59
      %p61 = scmp.ne.s32.totalorder %s53, %s56
      %p62 = scmp.eq.s32.totalorder %s13, 0
      %p63 = por %p61, %p62
      %p64 = scmp.ne.s32.totalorder %s53, %s56
      %p65 = scmp.eq.s32.totalorder %s18, 1
      %p66 = por %p64, %p65
      %p67 = scmp.ne.s32.totalorder %s56, %s57
      %p68 = scmp.eq.s32.totalorder %s18, 0
      %p69 = por %p67, %p68
      %p70 = scmp.ne.s32.totalorder %s56, %s57
      %p71 = scmp.eq.s32.totalorder %s19, 1
      %p72 = por %p70, %p71
      %p74 = scmp.ne.s32.totalorder %s57, %s73
      %p75 = scmp.eq.s32.totalorder %s19, 0
      %p76 = por %p74, %p75
      %p77 = scmp.le.s32.totalorder 1, %s13
      %p78 = scmp.lt.s32.totalorder %s13, 3
      %p79 = pnand %p77, %p78
      %p80 = pneg %p79
      // Predicated region
      $region9: #{tpu_custom_call.1} parent=5 // pred_check
        _
      $region10: #{tpu_custom_call.1} parent=5 // pred_check_branch
        %82 = sbr.rel (%p79) target = $region12
      $region11: #{tpu_custom_call.1} parent=5 // pred_region
        %s83 = ssub.s32 %s13, 1
      $region12: #{tpu_custom_call.1} parent=5 // pred_fallthru
        _
      %p84 = scmp.lt.s32.totalorder %s13, 2
      // Predicated region
      $region13: #{tpu_custom_call.1} parent=5 // pred_check
        %p85 = pneg %p84
      $region14: #{tpu_custom_call.1} parent=5 // pred_check_branch
        %87 = sbr.rel (%p85) target = $region16
      $region15: #{tpu_custom_call.1} parent=5 // pred_region
        // Predicated region
        $region17: #{tpu_custom_call.1} parent=15 // pred_check
          %p88 = pneg %p37
        $region18: #{tpu_custom_call.1} parent=15 // pred_check_branch
          %90 = sbr.rel (%p88) target = $region20
        $region19: #{tpu_custom_call.1} parent=15 // pred_region
          %s91 = sand.u32 %s27, 1
          %s92 = scalar_lea.sflag [#allocation4], %s91
          %s93 = sand.u32 %s27, 1
          %s94 = smul.addr %s93, 16
          %s95 = scalar_lea.vmem [#allocation3], %s94
          %p96 = scmp.lt.s32.totalorder %s13, 0
          %s97 = scalar_select %p96, %s13, 0
          %s98 = smul.u32 8, %s97
          %s100 = ssub.s32 256, 256
          %101 = vsyncadd %s92, %s100
          %s102 = smul.addr %s98, 32
          %s103 = scalar_lea.hbm %s0, %s102
          %s105 = sshll.u32 %s95, 4
          %s106 = int_to_ptr.vmem [resolvable:$true] %s105
          %108 = dma.hbm_to_vmem [thread:$0]  %s103, 256, %s106, %s92
        $region20: #{tpu_custom_call.1} parent=15 // pred_fallthru
          _
      $region16: #{tpu_custom_call.1} parent=5 // pred_fallthru
        _
      %p109 = scmp.le.s32.totalorder 1, %s13
      %p110 = scmp.lt.s32.totalorder %s13, 3
      %p111 = pnand %p109, %p110
      %p112 = pneg %p111
      // Predicated region
      $region21: #{tpu_custom_call.1} parent=5 // pred_check
        _
      $region22: #{tpu_custom_call.1} parent=5 // pred_check_branch
        %114 = sbr.rel (%p111) target = $region24
      $region23: #{tpu_custom_call.1} parent=5 // pred_region
        %s115 = ssub.s32 %s13, 1
        %s116 = sand.u32 %s30, 1
        %s117 = scalar_lea.sflag [#allocation4], %s116
        %s118 = sand.u32 %s30, 1
        %s119 = smul.addr %s118, 16
        %s120 = scalar_lea.vmem [#allocation3], %s119
        // Predicated region
        $region25: #{tpu_custom_call.1} parent=23 // pred_check
          %p121 = pneg %p43
        $region26: #{tpu_custom_call.1} parent=23 // pred_check_branch
          %123 = sbr.rel (%p121) target = $region28
        $region27: #{tpu_custom_call.1} parent=23 // pred_region
          %124 = dma.done %s117, 256
        $region28: #{tpu_custom_call.1} parent=23 // pred_fallthru
          _
        %s125 = sand.u32 %s30, 1
        %s126 = scalar_lea.sflag [#allocation4], %s125
        %s127 = sand.u32 %s30, 1
        %s128 = smul.addr %s127, 16
        %s129 = scalar_lea.vmem [#allocation3], %s128
        %p130 = pneg %p43
        %p131 = pneg %p40
        %p132 = pneg %p69
        %p133 = pneg %p66
        %s134 = sand.u32 %s56, 1
        %s135 = scalar_lea.sflag [#allocation5], %s134
        %s136 = sand.u32 %s56, 1
        %s137 = smul.addr %s136, 16
        %s138 = scalar_lea.vmem [#allocation6], %s137
        %p139 = scmp.lt.s32.totalorder %s18, 0
        %s140 = scalar_select %p139, %s18, 0
        %s141 = smul.u32 8, %s140
        %s142 = smul.u32 8, %s18
        %s143 = ssub.s32 10, %s142
        %p144 = scmp.lt.s32.totalorder %s143, 8
        %s145 = scalar_select %p144, %s143, 8
        %s146 = smul.u32 32, %s145
        %p147 = scmp.eq.s32.totalorder %s18, 0
        // Predicated region
        $region29: #{tpu_custom_call.1} parent=23 // pred_check
          %p148 = pneg %p147
        $region30: #{tpu_custom_call.1} parent=23 // pred_check_branch
          %150 = sbr.rel (%p148) target = $region32
        $region31: #{tpu_custom_call.1} parent=23 // pred_region
          %151 = vst [vmem:[#allocation2] sm:$0xff] 0.0
        $region32: #{tpu_custom_call.1} parent=23 // pred_fallthru
          _
        %p152 = scmp.lt.s32.totalorder %s18, 1
        // Predicated region
        $region33: #{tpu_custom_call.1} parent=23 // pred_check
          %p153 = pneg %p152
        $region34: #{tpu_custom_call.1} parent=23 // pred_check_branch
          %155 = sbr.rel (%p153) target = $region36
        $region35: #{tpu_custom_call.1} parent=23 // pred_region
          %v156 = vld [vmem:[%s120] sm:$0xff]
          %v157 = vld [vmem:[%s120 + $0x8] sm:$0xff]
          %158 = vst [vmem:[%s138] sm:$0xff] %v156
          %159 = vst [vmem:[%s138 + $0x8] sm:$0xff] %v157
          %v162 = vcombine.high %v156, %v156
          %v164 = vunpack.c.l.s4 1983009808
          %v165 = vunpack.c.0.s8 %v164
          %v166 = vlaneseq
          %v167 = vshrl.u32 %v166, 7
          %v168 = vsub.s32 %v165, %v167
          %v169 = vrot.slane %v156, %v168
          %v171 = vunpack.c.l.s4 1983009808
          %v172 = vunpack.c.0.s8 %v171
          %v173 = vlaneseq
          %v174 = vshrl.u32 %v173, 7
          %v175 = vsub.s32 %v172, %v174
          %v176 = vrot.slane %v162, %v175
          %v177 = vcombine.high %v169, %v169
          %v178 = vcombine.high %v176, %v176
          %v179 = vcombine.high %v157, %v157
          %v181 = vunpack.c.l.s4 1983009808
          %v182 = vunpack.c.0.s8 %v181
          %v183 = vlaneseq
          %v184 = vshrl.u32 %v183, 7
          %v185 = vsub.s32 %v182, %v184
          %v186 = vrot.slane %v157, %v185
          %v188 = vunpack.c.l.s4 1983009808
          %v189 = vunpack.c.0.s8 %v188
          %v190 = vlaneseq
          %v191 = vshrl.u32 %v190, 7
          %v192 = vsub.s32 %v189, %v191
          %v193 = vrot.slane %v179, %v192
          %v194 = vcombine.high %v186, %v186
          %v195 = vcombine.high %v193, %v193
          %vm204 = vcmask 1041408
          %v205 = vsel %vm204, %v169, 0.0
          %v206 = vrot.slane %v205, 4
          %v207 = vadd.f32 %v205, %v206
          %v208 = vrot.slane %v207, 2
          %v209 = vadd.f32 %v207, %v208
          %v210 = vrot.slane %v209, 1
          %v211 = vadd.f32 %v209, %v210
          %v212 = vsel %vm204, %v177, 0.0
          %v213 = vrot.slane %v212, 4
          %v214 = vadd.f32 %v212, %v213
          %v215 = vrot.slane %v214, 2
          %v216 = vadd.f32 %v214, %v215
          %v217 = vrot.slane %v216, 1
          %v218 = vadd.f32 %v216, %v217
          %v219 = vsel %vm204, %v176, 0.0
          %v220 = vrot.slane %v219, 4
          %v221 = vadd.f32 %v219, %v220
          %v222 = vrot.slane %v221, 2
          %v223 = vadd.f32 %v221, %v222
          %v224 = vrot.slane %v223, 1
          %v225 = vadd.f32 %v223, %v224
          %v226 = vsel %vm204, %v178, 0.0
          %v227 = vrot.slane %v226, 4
          %v228 = vadd.f32 %v226, %v227
          %v229 = vrot.slane %v228, 2
          %v230 = vadd.f32 %v228, %v229
          %v231 = vrot.slane %v230, 1
          %v232 = vadd.f32 %v230, %v231
          %v233 = vsel %vm204, %v186, 0.0
          %v234 = vrot.slane %v233, 4
          %v235 = vadd.f32 %v233, %v234
          %v236 = vrot.slane %v235, 2
          %v237 = vadd.f32 %v235, %v236
          %v238 = vrot.slane %v237, 1
          %v239 = vadd.f32 %v237, %v238
          %v240 = vsel %vm204, %v194, 0.0
          %v241 = vrot.slane %v240, 4
          %v242 = vadd.f32 %v240, %v241
          %v243 = vrot.slane %v242, 2
          %v244 = vadd.f32 %v242, %v243
          %v245 = vrot.slane %v244, 1
          %v246 = vadd.f32 %v244, %v245
          %v247 = vsel %vm204, %v193, 0.0
          %v248 = vrot.slane %v247, 4
          %v249 = vadd.f32 %v247, %v248
          %v250 = vrot.slane %v249, 2
          %v251 = vadd.f32 %v249, %v250
          %v252 = vrot.slane %v251, 1
          %v253 = vadd.f32 %v251, %v252
          %v254 = vsel %vm204, %v195, 0.0
          %v255 = vrot.slane %v254, 4
          %v256 = vadd.f32 %v254, %v255
          %v257 = vrot.slane %v256, 2
          %v258 = vadd.f32 %v256, %v257
          %v259 = vrot.slane %v258, 1
          %v260 = vadd.f32 %v258, %v259
          %v261 = vrcp.pop 2.0
          %v262 = vmul.f32 %v211, %v261
          %v263 = vmul.f32 %v218, %v261
          %v264 = vmul.f32 %v225, %v261
          %v265 = vmul.f32 %v232, %v261
          %v266 = vmul.f32 %v239, %v261
          %v267 = vmul.f32 %v246, %v261
          %v268 = vmul.f32 %v253, %v261
          %v269 = vmul.f32 %v260, %v261
          %v278 = vcombine.low %v262, %v263
          %v279 = vcombine.low %v264, %v265
          %v281 = vunpack.c.l.s4 1983009808
          %v282 = vunpack.c.0.s8 %v281
          %v283 = vlaneseq
          %v284 = vshrl.u32 %v283, 7
          %v285 = vsub.s32 %v282, %v284
          %v286 = vrot.slane %v278, %v285
          %v288 = vunpack.c.l.s4 1983009808
          %v289 = vunpack.c.0.s8 %v288
          %v290 = vlaneseq
          %v291 = vshrl.u32 %v290, 7
          %v292 = vsub.s32 %v289, %v291
          %v293 = vrot.slane %v279, %v292
          %v294 = vcombine.low %v286, %v293
          %v295 = vcombine.low %v266, %v267
          %v296 = vcombine.low %v268, %v269
          %v298 = vunpack.c.l.s4 1983009808
          %v299 = vunpack.c.0.s8 %v298
          %v300 = vlaneseq
          %v301 = vshrl.u32 %v300, 7
          %v302 = vsub.s32 %v299, %v301
          %v303 = vrot.slane %v295, %v302
          %v305 = vunpack.c.l.s4 1983009808
          %v306 = vunpack.c.0.s8 %v305
          %v307 = vlaneseq
          %v308 = vshrl.u32 %v307, 7
          %v309 = vsub.s32 %v306, %v308
          %v310 = vrot.slane %v296, %v309
          %v311 = vcombine.low %v303, %v310
          %v314 = vsub.f32 %v156, %v294
          %v315 = vsub.f32 %v157, %v311
          %v316 = vmul.f32 %v314, %v314
          %v317 = vmul.f32 %v315, %v315
          %v320 = vcombine.high %v316, %v316
          %v322 = vunpack.c.l.s4 1983009808
          %v323 = vunpack.c.0.s8 %v322
          %v324 = vlaneseq
          %v325 = vshrl.u32 %v324, 7
          %v326 = vsub.s32 %v323, %v325
          %v327 = vrot.slane %v316, %v326
          %v329 = vunpack.c.l.s4 1983009808
          %v330 = vunpack.c.0.s8 %v329
          %v331 = vlaneseq
          %v332 = vshrl.u32 %v331, 7
          %v333 = vsub.s32 %v330, %v332
          %v334 = vrot.slane %v320, %v333
          %v335 = vcombine.high %v327, %v327
          %v336 = vcombine.high %v334, %v334
          %v337 = vcombine.high %v317, %v317
          %v339 = vunpack.c.l.s4 1983009808
          %v340 = vunpack.c.0.s8 %v339
          %v341 = vlaneseq
          %v342 = vshrl.u32 %v341, 7
          %v343 = vsub.s32 %v340, %v342
          %v344 = vrot.slane %v317, %v343
          %v346 = vunpack.c.l.s4 1983009808
          %v347 = vunpack.c.0.s8 %v346
          %v348 = vlaneseq
          %v349 = vshrl.u32 %v348, 7
          %v350 = vsub.s32 %v347, %v349
          %v351 = vrot.slane %v337, %v350
          %v352 = vcombine.high %v344, %v344
          %v353 = vcombine.high %v351, %v351
          %v362 = vsel %vm204, %v327, 0.0
          %v363 = vrot.slane %v362, 4
          %v364 = vadd.f32 %v362, %v363
          %v365 = vrot.slane %v364, 2
          %v366 = vadd.f32 %v364, %v365
          %v367 = vrot.slane %v366, 1
          %v368 = vadd.f32 %v366, %v367
          %v369 = vsel %vm204, %v335, 0.0
          %v370 = vrot.slane %v369, 4
          %v371 = vadd.f32 %v369, %v370
          %v372 = vrot.slane %v371, 2
          %v373 = vadd.f32 %v371, %v372
          %v374 = vrot.slane %v373, 1
          %v375 = vadd.f32 %v373, %v374
          %v376 = vsel %vm204, %v334, 0.0
          %v377 = vrot.slane %v376, 4
          %v378 = vadd.f32 %v376, %v377
          %v379 = vrot.slane %v378, 2
          %v380 = vadd.f32 %v378, %v379
          %v381 = vrot.slane %v380, 1
          %v382 = vadd.f32 %v380, %v381
          %v383 = vsel %vm204, %v336, 0.0
          %v384 = vrot.slane %v383, 4
          %v385 = vadd.f32 %v383, %v384
          %v386 = vrot.slane %v385, 2
          %v387 = vadd.f32 %v385, %v386
          %v388 = vrot.slane %v387, 1
          %v389 = vadd.f32 %v387, %v388
          %v390 = vsel %vm204, %v344, 0.0
          %v391 = vrot.slane %v390, 4
          %v392 = vadd.f32 %v390, %v391
          %v393 = vrot.slane %v392, 2
          %v394 = vadd.f32 %v392, %v393
          %v395 = vrot.slane %v394, 1
          %v396 = vadd.f32 %v394, %v395
          %v397 = vsel %vm204, %v352, 0.0
          %v398 = vrot.slane %v397, 4
          %v399 = vadd.f32 %v397, %v398
          %v400 = vrot.slane %v399, 2
          %v401 = vadd.f32 %v399, %v400
          %v402 = vrot.slane %v401, 1
          %v403 = vadd.f32 %v401, %v402
          %v404 = vsel %vm204, %v351, 0.0
          %v405 = vrot.slane %v404, 4
          %v406 = vadd.f32 %v404, %v405
          %v407 = vrot.slane %v406, 2
          %v408 = vadd.f32 %v406, %v407
          %v409 = vrot.slane %v408, 1
          %v410 = vadd.f32 %v408, %v409
          %v411 = vsel %vm204, %v353, 0.0
          %v412 = vrot.slane %v411, 4
          %v413 = vadd.f32 %v411, %v412
          %v414 = vrot.slane %v413, 2
          %v415 = vadd.f32 %v413, %v414
          %v416 = vrot.slane %v415, 1
          %v417 = vadd.f32 %v415, %v416
          %v418 = vmul.f32 %v368, %v261
          %v419 = vmul.f32 %v375, %v261
          %v420 = vmul.f32 %v382, %v261
          %v421 = vmul.f32 %v389, %v261
          %v422 = vmul.f32 %v396, %v261
          %v423 = vmul.f32 %v403, %v261
          %v424 = vmul.f32 %v410, %v261
          %v425 = vmul.f32 %v417, %v261
          %v426 = vld [vmem:[#allocation2] sm:$0xff]
          %v427 = vadd.f32 %v418, 1e-08
          %v428 = vadd.f32 %v419, 1e-08
          %v429 = vadd.f32 %v420, 1e-08
          %v430 = vadd.f32 %v421, 1e-08
          %v431 = vadd.f32 %v422, 1e-08
          %v432 = vadd.f32 %v423, 1e-08
          %v433 = vadd.f32 %v424, 1e-08
          %v434 = vadd.f32 %v425, 1e-08
          %v435 = vrsqrt.pop %v427
          %v436 = vmul.f32 %v427, %v435
          %vm437 = vcmp.eq.f32.partialorder %v427, inf
          %v438 = vsel %vm437, %v427, %v436
          %vm439 = vcmp.eq.f32.partialorder %v427, 0.0
          %v440 = vand.u32 %v427, 2147483648
          %v441 = vsel %vm439, %v440, %v438
          %v442 = vrsqrt.pop %v428
          %v443 = vmul.f32 %v428, %v442
          %vm444 = vcmp.eq.f32.partialorder %v428, inf
          %v445 = vsel %vm444, %v428, %v443
          %vm446 = vcmp.eq.f32.partialorder %v428, 0.0
          %v447 = vand.u32 %v428, 2147483648
          %v448 = vsel %vm446, %v447, %v445
          %v449 = vrsqrt.pop %v429
          %v450 = vmul.f32 %v429, %v449
          %vm451 = vcmp.eq.f32.partialorder %v429, inf
          %v452 = vsel %vm451, %v429, %v450
          %vm453 = vcmp.eq.f32.partialorder %v429, 0.0
          %v454 = vand.u32 %v429, 2147483648
          %v455 = vsel %vm453, %v454, %v452
          %v456 = vrsqrt.pop %v430
          %v457 = vmul.f32 %v430, %v456
          %vm458 = vcmp.eq.f32.partialorder %v430, inf
          %v459 = vsel %vm458, %v430, %v457
          %vm460 = vcmp.eq.f32.partialorder %v430, 0.0
          %v461 = vand.u32 %v430, 2147483648
          %v462 = vsel %vm460, %v461, %v459
          %v463 = vrsqrt.pop %v431
          %v464 = vmul.f32 %v431, %v463
          %vm465 = vcmp.eq.f32.partialorder %v431, inf
          %v466 = vsel %vm465, %v431, %v464
          %vm467 = vcmp.eq.f32.partialorder %v431, 0.0
          %v468 = vand.u32 %v431, 2147483648
          %v469 = vsel %vm467, %v468, %v466
          %v470 = vrsqrt.pop %v432
          %v471 = vmul.f32 %v432, %v470
          %vm472 = vcmp.eq.f32.partialorder %v432, inf
          %v473 = vsel %vm472, %v432, %v471
          %vm474 = vcmp.eq.f32.partialorder %v432, 0.0
          %v475 = vand.u32 %v432, 2147483648
          %v476 = vsel %vm474, %v475, %v473
          %v477 = vrsqrt.pop %v433
          %v478 = vmul.f32 %v433, %v477
          %vm479 = vcmp.eq.f32.partialorder %v433, inf
          %v480 = vsel %vm479, %v433, %v478
          %vm481 = vcmp.eq.f32.partialorder %v433, 0.0
          %v482 = vand.u32 %v433, 2147483648
          %v483 = vsel %vm481, %v482, %v480
          %v484 = vrsqrt.pop %v434
          %v485 = vmul.f32 %v434, %v484
          %vm486 = vcmp.eq.f32.partialorder %v434, inf
          %v487 = vsel %vm486, %v434, %v485
          %vm488 = vcmp.eq.f32.partialorder %v434, 0.0
          %v489 = vand.u32 %v434, 2147483648
          %v490 = vsel %vm488, %v489, %v487
          %v499 = vcombine.low %v441, %v448
          %v500 = vcombine.low %v455, %v462
          %v501 = vcombine.low %v469, %v476
          %v502 = vcombine.low %v483, %v490
          %v504 = vunpack.c.l.s4 1966171168
          %v505 = vunpack.c.0.s8 %v504
          %v506 = vlaneseq
          %v507 = vshrl.u32 %v506, 7
          %v508 = vsub.s32 %v505, %v507
          %v509 = vrot.slane %v499, %v508
          %v511 = vunpack.c.l.s4 1966171168
          %v512 = vunpack.c.0.s8 %v511
          %v513 = vlaneseq
          %v514 = vshrl.u32 %v513, 7
          %v515 = vsub.s32 %v512, %v514
          %v516 = vrot.slane %v500, %v515
          %v518 = vunpack.c.l.s4 1966171168
          %v519 = vunpack.c.0.s8 %v518
          %v520 = vlaneseq
          %v521 = vshrl.u32 %v520, 7
          %v522 = vsub.s32 %v519, %v521
          %v523 = vrot.slane %v501, %v522
          %v525 = vunpack.c.l.s4 1966171168
          %v526 = vunpack.c.0.s8 %v525
          %v527 = vlaneseq
          %v528 = vshrl.u32 %v527, 7
          %v529 = vsub.s32 %v526, %v528
          %v530 = vrot.slane %v502, %v529
          %v531 = vcombine.low %v509, %v516
          %v532 = vcombine.low %v523, %v530
          %v534 = vunpack.c.l.s4 1966171168
          %v535 = vunpack.c.0.s8 %v534
          %v536 = vlaneseq
          %v537 = vshrl.u32 %v536, 7
          %v538 = vsub.s32 %v535, %v537
          %v539 = vrot.slane %v531, %v538
          %v541 = vunpack.c.l.s4 1966171168
          %v542 = vunpack.c.0.s8 %v541
          %v543 = vlaneseq
          %v544 = vshrl.u32 %v543, 7
          %v545 = vsub.s32 %v542, %v544
          %v546 = vrot.slane %v532, %v545
          %v547 = vcombine.low %v539, %v546
          %v549 = vadd.f32 %v426, %v547
          %550 = vst [vmem:[#allocation2] sm:$0xff] %v549
        $region36: #{tpu_custom_call.1} parent=23 // pred_fallthru
          _
        %p551 = scmp.ge.s32.totalorder %s18, 1
        // Predicated region
        $region37: #{tpu_custom_call.1} parent=23 // pred_check
          %p552 = pneg %p551
        $region38: #{tpu_custom_call.1} parent=23 // pred_check_branch
          %554 = sbr.rel (%p552) target = $region40
        $region39: #{tpu_custom_call.1} parent=23 // pred_region
          %v555 = vld [vmem:[#allocation2] sm:$0xff]
          %v557 = vlaneseq
          %v558 = vshrl.u32 %v557, 7
          %v559 = vsub.s32 0, %v558
          %v560 = vrot.slane %v555, %v559
          %v561 = vlaneseq
          %v562 = vshrl.u32 %v561, 7
          %v563 = vsub.s32 1, %v562
          %v564 = vrot.slane %v555, %v563
          %v565 = vlaneseq
          %v566 = vshrl.u32 %v565, 7
          %v567 = vsub.s32 2, %v566
          %v568 = vrot.slane %v555, %v567
          %v569 = vlaneseq
          %v570 = vshrl.u32 %v569, 7
          %v571 = vsub.s32 3, %v570
          %v572 = vrot.slane %v555, %v571
          %v573 = vlaneseq
          %v574 = vshrl.u32 %v573, 7
          %v575 = vsub.s32 4, %v574
          %v576 = vrot.slane %v555, %v575
          %v577 = vlaneseq
          %v578 = vshrl.u32 %v577, 7
          %v579 = vsub.s32 5, %v578
          %v580 = vrot.slane %v555, %v579
          %v581 = vlaneseq
          %v582 = vshrl.u32 %v581, 7
          %v583 = vsub.s32 6, %v582
          %v584 = vrot.slane %v555, %v583
          %v585 = vlaneseq
          %v586 = vshrl.u32 %v585, 7
          %v587 = vsub.s32 7, %v586
          %v588 = vrot.slane %v555, %v587
          %vm597 = vcmask 1040384
          %v598 = vsel %vm597, %v560, 0.0
          %v599 = vsel %vm597, %v564, 0.0
          %v600 = vadd.f32 %v598, %v599
          %v601 = vsel %vm597, %v568, 0.0
          %v602 = vadd.f32 %v600, %v601
          %v603 = vsel %vm597, %v572, 0.0
          %v604 = vadd.f32 %v602, %v603
          %v605 = vsel %vm597, %v576, 0.0
          %v606 = vadd.f32 %v604, %v605
          %v607 = vsel %vm597, %v580, 0.0
          %v608 = vadd.f32 %v606, %v607
          %v609 = vsel %vm597, %v584, 0.0
          %v610 = vadd.f32 %v608, %v609
          %v611 = vsel %vm597, %v588, 0.0
          %v612 = vadd.f32 %v610, %v611
          %613 = vadd.xlane.f32.xlu0 %v612
          %v614 = vpop.xlane.xlu0 %613
          %v615 = vmul.f32 %v614, 0.0009765625
          %v616 = vlaneseq
          %v617 = vshrl.u32 %v616, 7
          %v618 = vsub.s32 0, %v617
          %v619 = vrot.slane %v615, %v618
          %620 = vst [vmem:[%s138] sm:$0xff] %v619
          %621 = vst [vmem:[%s138 + $0x8] sm:$0xff] %v619
        $region40: #{tpu_custom_call.1} parent=23 // pred_fallthru
          _
        %s622 = sand.u32 %s56, 1
        %s623 = scalar_lea.sflag [#allocation5], %s622
        %s624 = sand.u32 %s56, 1
        %s625 = smul.addr %s624, 16
        %s626 = scalar_lea.vmem [#allocation6], %s625
        // Predicated region
        $region41: #{tpu_custom_call.1} parent=23 // pred_check
          %p627 = pneg %p66
        $region42: #{tpu_custom_call.1} parent=23 // pred_check_branch
          %629 = sbr.rel (%p627) target = $region44
        $region43: #{tpu_custom_call.1} parent=23 // pred_region
          %s630 = smul.u32 8, %s18
          %s631 = ssub.s32 10, %s630
          %p632 = scmp.lt.s32.totalorder %s631, 8
          %s633 = scalar_select %p632, %s631, 8
          %s634 = smul.u32 32, %s633
          %s636 = ssub.s32 256, %s634
          %637 = vsyncadd %s623, %s636
          %p638 = scmp.ne.s32.totalorder 0, %s634
          %s639 = smul.addr %s630, 32
          %s640 = scalar_lea.hbm %s1, %s639
          %s641 = smul.u32 %s633, 2
          %s642 = sshll.u32 %s641, 4
          %s643 = sshll.u32 %s626, 4
          %s644 = int_to_ptr.vmem [resolvable:$true] %s643
          %646 = dma.vmem_to_hbm [thread:$0]  (%p638), %s644, %s642, %s640, %s623
        $region44: #{tpu_custom_call.1} parent=23 // pred_fallthru
          _
      $region24: #{tpu_custom_call.1} parent=5 // pred_fallthru
        _
      %p647 = scmp.le.s32.totalorder 2, %s13
      // Predicated region
      $region45: #{tpu_custom_call.1} parent=5 // pred_check
        %p648 = pneg %p647
      $region46: #{tpu_custom_call.1} parent=5 // pred_check_branch
        %650 = sbr.rel (%p648) target = $region48
      $region47: #{tpu_custom_call.1} parent=5 // pred_region
        %s651 = ssub.s32 %s13, 2
        // Predicated region
        $region49: #{tpu_custom_call.1} parent=47 // pred_check
          %p652 = pneg %p72
        $region50: #{tpu_custom_call.1} parent=47 // pred_check_branch
          %654 = sbr.rel (%p652) target = $region52
        $region51: #{tpu_custom_call.1} parent=47 // pred_region
          %s655 = sand.u32 %s57, 1
          %s656 = scalar_lea.sflag [#allocation5], %s655
          %s657 = sand.u32 %s57, 1
          %s658 = smul.addr %s657, 16
          %s659 = scalar_lea.vmem [#allocation6], %s658
          %660 = dma.done %s656, 256
        $region52: #{tpu_custom_call.1} parent=47 // pred_fallthru
          _
      $region48: #{tpu_custom_call.1} parent=5 // pred_fallthru
        _
    $region6: #{tpu_custom_call.1} parent=1 // loop_footer
      %s17 = sadd.s32 1, %s13
    $region7: #{tpu_custom_call.1} parent=1 // loop_footer_branch
      %12 = sbr.rel target = $region3
    $region8: #{tpu_custom_call.1} parent=1 // loop_exit
      _
    %661 = vsyncpa [#allocation4], 1
    %s662 = scalar_lea.sflag [#allocation4], 1
    %663 = vsyncpa %s662, 1
    %664 = vsyncpa [#allocation5], 1
    %s665 = scalar_lea.sflag [#allocation5], 1
    %666 = vsyncpa %s665, 1

</llo_original>
